<compile_context>
chip_gen: v7x
topology: tpu7x:2x2x1
jax: 0.10.0
libtpu: 0.0.40
codegen_flags: <defaults>
</compile_context>

<pallas_src>
import functools

import jax
import jax.numpy as jnp
from jax.experimental import pallas as pl
from jax.experimental.pallas import tpu as pltpu

LANE = 128
_VMEM_LIMIT = 32 << 20   # scoped VMEM cap: above v5e/v6e defaults, within v7x physical
_ROW_BUDGET = 6 << 20    # per-step budget for row tiles (leaves headroom for
                         # double-buffering + resident weights)


# ----------------------------------------------------------------------------
# Small helpers
# ----------------------------------------------------------------------------
def _round_up(n: int, m: int = LANE) -> int:
    return ((n + m - 1) // m) * m


def _pad_to(x, shape):
    return jnp.pad(x, [(0, s - d) for d, s in zip(x.shape, shape)])


def _row_tile(M: int, bytes_per_row: int, budget: int = _ROW_BUDGET) -> int:
    """Largest row tile that divides M, fits the VMEM budget, and (when possible)
    leaves >= 2 grid steps so both v7x TensorCores get work."""
    cands = [t for t in (1024, 512, 256, 128, 64, 32, 16, 8)
             if t <= M and M % t == 0]
    if not cands:
        return M                      # full-dim block is always legal
    fits = [t for t in cands if t * bytes_per_row <= budget]
    tm = fits[0] if fits else cands[-1]
    while M // tm < 2 and tm > 8 and M % (tm // 2) == 0:
        tm //= 2
    return tm


# ----------------------------------------------------------------------------
# Pallas kernels
# ----------------------------------------------------------------------------
def _matmul_kernel(x_ref, w_ref, o_ref):
    """o = x @ w with f32 accumulation (used for the tiny stem patchify conv)."""
    o_ref[...] = jnp.dot(
        x_ref[...], w_ref[...], preferred_element_type=jnp.float32
    ).astype(o_ref.dtype)


def _stage_kernel(p_ref, dw_ref, w1s_ref, b1s_ref, w2s_ref, b2s_ref, o_ref,
                  *, depth, c_true):
    """Fused stage: downsample matmul + `depth` residual LN->MLP blocks.

    p_ref  : [tm, 4*Cin_p]  bf16 patch rows
    dw_ref : [4*Cin_p, Cp]  bf16 downsample weight
    w1s_ref: [depth, Cp, Hp] bf16 (gamma folded in),  b1s_ref: [depth, 1, Hp] f32
    w2s_ref: [depth, Hp, Cp] bf16,                    b2s_ref: [depth, 1, Cp] f32
    o_ref  : [tm, Cp]       bf16
    """
    cp = o_ref.shape[-1]
    # Downsample conv as a matmul; result stays resident in f32 for all blocks.
    x = jnp.dot(p_ref[...], dw_ref[...], preferred_element_type=jnp.float32)

    lane_valid = jax.lax.broadcasted_iota(jnp.int32, (1, cp), 1) < c_true
    inv_c = jnp.float32(1.0 / c_true)

    for d in range(depth):            # depth is small & static -> unrolled
        # LayerNorm over the true channels (padded lanes of x are exactly 0).
        mu = jnp.sum(x, axis=-1, keepdims=True) * inv_c
        diff = jnp.where(lane_valid, x - mu, 0.0)
        var = jnp.sum(diff * diff, axis=-1, keepdims=True) * inv_c
        xn = diff * jax.lax.rsqrt(var + 1e-6)
        # gamma/beta pre-folded: (xn*g+b)@w1+b1 == xn@(diag(g)@w1) + (b@w1+b1).
        h = jnp.dot(xn.astype(w1s_ref.dtype), w1s_ref[d],
                    preferred_element_type=jnp.float32) + b1s_ref[d]
        h = jax.nn.gelu(h, approximate=False)          # exact GELU (nn.GELU())
        y = jnp.dot(h.astype(w2s_ref.dtype), w2s_ref[d],
                    preferred_element_type=jnp.float32) + b2s_ref[d]
        x = x + y                                      # drop-path = identity
    o_ref[...] = x.astype(o_ref.dtype)


# ----------------------------------------------------------------------------
# pallas_call wrappers
# ----------------------------------------------------------------------------
def pallas_matmul(x, w):
    """x: [M, K] @ w: [K, N] -> [M, N]   (stem patchify conv)."""
    M, K = x.shape
    _, N = w.shape
    tm = _row_tile(M, bytes_per_row=4 * (K + 2 * N))
    return pl.pallas_call(
        _matmul_kernel,
        out_shape=jax.ShapeDtypeStruct((M, N), x.dtype),
        grid=(M // tm,),
        in_specs=[
            pl.BlockSpec((tm, K), lambda i: (i, 0)),
            pl.BlockSpec((K, N), lambda i: (0, 0)),
        ],
        out_specs=pl.BlockSpec((tm, N), lambda i: (i, 0)),
        compiler_params=pltpu.CompilerParams(
            dimension_semantics=("parallel",),
            vmem_limit_bytes=_VMEM_LIMIT,
        ),
    )(x, w)


def pallas_stage(p, st):
    """Fused downsample + residual-block stack for one stage.

    p : [M, 4*Cin_p] bf16 patch rows.  Returns [M, Cp] bf16.
    """
    M, K = p.shape
    cp, hp, depth = st["cp"], st["hp"], st["depth"]
    # rough per-row VMEM: double-buffered bf16 in/out + f32 intermediates.
    bytes_per_row = 2 * 2 * (K + cp) + 4 * (3 * cp + hp)
    tm = _row_tile(M, bytes_per_row)
    kern = functools.partial(_stage_kernel, depth=depth, c_true=st["c"])
    # NOTE: weight specs use a constant block index -> weights stay VMEM-resident.
    # TODO(synk): for very large widths on v7x (64 MiB VMEM), add
    #             pipeline_mode=pl.Buffered(1) on the weight specs or tile K/N.
    return pl.pallas_call(
        kern,
        out_shape=jax.ShapeDtypeStruct((M, cp), jnp.bfloat16),
        grid=(M // tm,),
        in_specs=[
            pl.BlockSpec((tm, K), lambda i: (i, 0)),             # patch rows
            pl.BlockSpec((K, cp), lambda i: (0, 0)),             # downsample w
            pl.BlockSpec((depth, cp, hp), lambda i: (0, 0, 0)),  # w1 stack
            pl.BlockSpec((depth, 1, hp), lambda i: (0, 0, 0)),   # b1 stack
            pl.BlockSpec((depth, hp, cp), lambda i: (0, 0, 0)),  # w2 stack
            pl.BlockSpec((depth, 1, cp), lambda i: (0, 0, 0)),   # b2 stack
        ],
        out_specs=pl.BlockSpec((tm, cp), lambda i: (i, 0)),
        compiler_params=pltpu.CompilerParams(
            dimension_semantics=("parallel",),
            vmem_limit_bytes=_VMEM_LIMIT,
        ),
    )(p, st["dw"], st["w1s"], st["b1s"], st["w2s"], st["b2s"])


# ----------------------------------------------------------------------------
# 2x2 / stride-2 patch extraction (conv -> matmul)
# ----------------------------------------------------------------------------
def _extract_patches(x_nhwc):
    """[N, H, W, C] -> ([N*H/2*W/2, 4*C], (N, H/2, W/2)); flatten order (kh, kw, c)."""
    # TODO(synk): patch extraction is materialized by XLA before the kernel; it could
    #             be fused into the pallas_call via an index_map over (n, h2, w2).
    N, H, W, C = x_nhwc.shape
    H2, W2 = H // 2, W // 2
    p = x_nhwc.reshape(N, H2, 2, W2, 2, C).transpose(0, 1, 3, 2, 4, 5)
    return p.reshape(N * H2 * W2, 4 * C), (N, H2, W2)


def _conv_w_to_mat(w_conv, cin_pad, cout_pad):
    """[Cout, Cin, 2, 2] -> zero-padded [4*cin_pad, cout_pad] matmul weight whose row
    order matches the (kh, kw, c) patch flattening."""
    cout, cin = w_conv.shape[:2]
    w = jnp.zeros((cout_pad, cin_pad, 2, 2), jnp.float32).at[:cout, :cin].set(w_conv)
    return w.transpose(2, 3, 1, 0).reshape(4 * cin_pad, cout_pad)


# ----------------------------------------------------------------------------
# Parameter construction (deterministic, synthetic) + kernel-ready preparation
# ----------------------------------------------------------------------------
def _conv_w(key, cout, cin, k):
    fan_in = cin * k * k
    return (jax.random.normal(key, (cout, cin, k, k), jnp.float32)
            * (2.0 / fan_in) ** 0.5)


def _lin_w(key, fin, fout):
    return jax.random.normal(key, (fin, fout), jnp.float32) * (2.0 / fin) ** 0.5


def init_backbone_params(key, in_dim, stem_dim, widths, depths):
    """f32, PyTorch-layout parameters (also used by the pure-JAX reference)."""
    params = {}
    key, k = jax.random.split(key)
    params["stem_w"] = _conv_w(k, stem_dim, in_dim, 2)   # Conv2d(in, stem, 2, 2, bias=False)
    in_out = [(stem_dim, widths[0])] + list(zip(widths[:-1], widths[1:]))
    stages = []
    for (cin, cout), depth in zip(in_out, depths):
        key, k = jax.random.split(key)
        down_w = _conv_w(k, cout, cin, 2)
        blocks = []
        hid = 4 * cout
        for _ in range(depth):
            key, k1, k2 = jax.random.split(key, 3)
            blocks.append(dict(
                gamma=jnp.ones((1, cout), jnp.float32),
                beta=jnp.zeros((1, cout), jnp.float32),
                w1=_lin_w(k1, cout, hid),
                b1=jnp.zeros((1, hid), jnp.float32),
                w2=_lin_w(k2, hid, cout),
                b2=jnp.zeros((1, cout), jnp.float32),
            ))
        stages.append(dict(down_w=down_w, blocks=blocks))
    params["stages"] = stages
    return params


def prepare_params(params):
    """Fold LN affine, lane-pad to multiples of 128, stack per-stage weights, cast
    matmul weights to bf16 (biases stay f32)."""
    stem_w = params["stem_w"]
    stem_dim, in_dim = stem_w.shape[:2]
    stem_p = _round_up(stem_dim)
    prepared = {
        # Stem contraction K = 4*in_dim stays unpadded (tiny); only the output
        # channel dim is lane-padded.
        "stem_w_mat": _conv_w_to_mat(stem_w, in_dim, stem_p).astype(jnp.bfloat16),
        "stages": [],
    }
    cin_p = stem_p
    for stage in params["stages"]:
        dw = stage["down_w"]
        c = dw.shape[0]
        cp = _round_up(c)
        hid = stage["blocks"][0]["w1"].shape[1]
        hp = _round_up(hid)
        w1s, b1s, w2s, b2s = [], [], [], []
        for blk in stage["blocks"]:
            gamma = blk["gamma"].reshape(-1)
            beta = blk["beta"].reshape(-1)
            w1 = blk["w1"]
            b1 = blk["b1"].reshape(-1)
            w1f = gamma[:, None] * w1          # diag(gamma) @ w1
            b1f = beta @ w1 + b1               # beta @ w1 + b1
            w1s.append(_pad_to(w1f, (cp, hp)))
            b1s.append(_pad_to(b1f[None, :], (1, hp)))
            w2s.append(_pad_to(blk["w2"], (hp, cp)))
            b2s.append(_pad_to(blk["b2"].reshape(1, -1), (1, cp)))
        prepared["stages"].append(dict(
            c=c, cp=cp, hp=hp, depth=len(stage["blocks"]),
            dw=_conv_w_to_mat(dw, cin_p, cp).astype(jnp.bfloat16),
            w1s=jnp.stack(w1s).astype(jnp.bfloat16),
            b1s=jnp.stack(b1s).astype(jnp.float32),
            w2s=jnp.stack(w2s).astype(jnp.bfloat16),
            b2s=jnp.stack(b2s).astype(jnp.float32),
        ))
        cin_p = cp
    return prepared


# ----------------------------------------------------------------------------
# Backbone forward (Pallas) + pure-JAX reference
# ----------------------------------------------------------------------------
def backbone_forward(prepared, x_nchw):
    """x_nchw: [N, Cin, H, W] -> list of per-stage features in NCHW (f32)."""
    x = jnp.transpose(x_nchw, (0, 2, 3, 1)).astype(jnp.bfloat16)   # NHWC, bf16
    # Stem: Conv2d(in_dim, stem_dim, 2, 2, bias=False) as a patchify matmul.
    p, (N, H2, W2) = _extract_patches(x)
    x = pallas_matmul(p, prepared["stem_w_mat"]).reshape(N, H2, W2, -1)
    feats = []
    for st in prepared["stages"]:
        p, (N, H2, W2) = _extract_patches(x)
        rows = pallas_stage(p, st)                  # fused downsample + blocks
        x = rows.reshape(N, H2, W2, st["cp"])
        feats.append(
            jnp.transpose(x[..., :st["c"]].astype(jnp.float32), (0, 3, 1, 2)))
    return feats


def reference_forward(params, x_nchw):
    """Pure-JAX f32 reference of the same forward (sanity check only)."""
    def conv2x2(x, w):
        N, H, W, C = x.shape
        p = (x.reshape(N, H // 2, 2, W // 2, 2, C)
              .transpose(0, 1, 3, 2, 4, 5)
              .reshape(N, H // 2, W // 2, 4 * C))
        wm = w.transpose(2, 3, 1, 0).reshape(4 * C, w.shape[0])
        return p @ wm

    x = jnp.transpose(x_nchw, (0, 2, 3, 1))
    x = conv2x2(x, params["stem_w"])
    feats = []
    for st in params["stages"]:
        x = conv2x2(x, st["down_w"])
        N, H, W, C = x.shape
        r = x.reshape(-1, C)
        for blk in st["blocks"]:
            mu = jnp.mean(r, -1, keepdims=True)
            var = jnp.mean((r - mu) ** 2, -1, keepdims=True)
            xn = (r - mu) * jax.lax.rsqrt(var + 1e-6)
            xn = xn * blk["gamma"] + blk["beta"]
            h = jax.nn.gelu(xn @ blk["w1"] + blk["b1"], approximate=False)
            r = r + (h @ blk["w2"] + blk["b2"])
        x = r.reshape(N, H, W, C)
        feats.append(jnp.transpose(x, (0, 3, 1, 2)))
    return feats


# ----------------------------------------------------------------------------
# Demo
# ----------------------------------------------------------------------------
if __name__ == "__main__":
    batch, in_dim, spatial = 2, 4, 16
    stem_dim = 8
    widths = [16, 32]
    depths = [2, 2]
    # drop_p = 0.0 -> drop path is identity (eval semantics).

    key = jax.random.PRNGKey(0)
    key, pk, xk = jax.random.split(key, 3)
    params = init_backbone_params(pk, in_dim, stem_dim, widths, depths)
    prepared = prepare_params(params)
    x = jax.random.normal(xk, (batch, in_dim, spatial, spatial), jnp.float32)

    feats = backbone_forward(prepared, x)
    feats = [jax.block_until_ready(f) for f in feats]

    # Shape sanity: stem halves spatial, each stage halves again.
    assert feats[0].shape == (batch, widths[0], spatial // 4, spatial // 4)
    assert feats[1].shape == (batch, widths[1], spatial // 8, spatial // 8)
    assert all(bool(jnp.all(jnp.isfinite(f))) for f in feats)

    # Loose numerical check vs pure-JAX f32 reference (kernel path uses bf16 with
    # f32 accumulation, so allow a generous tolerance).
    refs = reference_forward(params, x)
    for f, r in zip(feats, refs):
        err = float(jnp.max(jnp.abs(f - r)))
        scale = float(jnp.max(jnp.abs(r))) + 1e-6
        assert err <= 0.15 * scale + 0.05, (err, scale)

    print("KERNEL_OK")
</pallas_src>

<mosaic_0001>
module attributes {stable_mosaic.version = 11 : i64} {
  func.func @_matmul_kernel(%arg0: i32, %arg1: memref<64x16xbf16, #tpu.memory_space<vmem>>, %arg2: memref<16x128xbf16, #tpu.memory_space<vmem>>, %arg3: memref<64x128xbf16, #tpu.memory_space<vmem>>) attributes {dimension_semantics = [#tpu.dimension_semantics<parallel>], iteration_bounds = array<i64: 2>, scalar_prefetch = 0 : i64, scratch_operands = 0 : i64, tpu.core_type = #tpu.core_type<tc>, window_params = [{transform_indices = @transform_0, window_bounds = array<i64: 64, 16>}, {pipeline_mode = #tpu.pipeline_mode<synchronous>, transform_indices = @transform_1, window_bounds = array<i64: 16, 128>}, {transform_indices = @transform_2, window_bounds = array<i64: 64, 128>}]} {
    %c0 = arith.constant 0 : index
    %c0_0 = arith.constant 0 : index
    %0 = vector.load %arg1[%c0, %c0_0] : memref<64x16xbf16, #tpu.memory_space<vmem>>, vector<64x16xbf16>
    %c0_1 = arith.constant 0 : index
    %c0_2 = arith.constant 0 : index
    %1 = vector.load %arg2[%c0_1, %c0_2] : memref<16x128xbf16, #tpu.memory_space<vmem>>, vector<16x128xbf16>
    %cst = arith.constant dense<0.000000e+00> : vector<64x128xf32>
    %2 = tpu.matmul %0, %1, %cst {dimension_numbers = #tpu.dot_dimension_numbers<[1], [0], [0], [1], [0, 0, 1, 1], [], []>} : vector<64x16xbf16>, vector<16x128xbf16>, vector<64x128xf32> -> vector<64x128xf32>
    %3 = arith.truncf %2 : vector<64x128xf32> to vector<64x128xbf16>
    %c0_3 = arith.constant 0 : index
    %c0_4 = arith.constant 0 : index
    %4 = vector.load %arg3[%c0_3, %c0_4] : memref<64x128xbf16, #tpu.memory_space<vmem>>, vector<64x128xbf16>
    tpu.vector_store %arg3[%c0_3, %c0_4], %3 {strides = array<i32>} : memref<64x128xbf16, #tpu.memory_space<vmem>>, vector<64x128xbf16>,
    return
  }
  func.func @transform_0(%arg0: i32) -> (i32, i32) {
    %c0_i32 = arith.constant 0 : i32
    %c0_i32_0 = arith.constant 0 : i32
    return %arg0, %c0_i32 : i32, i32
  }
  func.func @transform_1(%arg0: i32) -> (i32, i32) {
    %c0_i32 = arith.constant 0 : i32
    %c0_i32_0 = arith.constant 0 : i32
    %c0_i32_1 = arith.constant 0 : i32
    return %c0_i32, %c0_i32_0 : i32, i32
  }
  func.func @transform_2(%arg0: i32) -> (i32, i32) {
    %c0_i32 = arith.constant 0 : i32
    %c0_i32_0 = arith.constant 0 : i32
    return %arg0, %c0_i32 : i32, i32
  }
}

</mosaic_0001>

<llo_original>
// kernel: tpu_custom_call.1
$region0: #{tpu_custom_call.1}
  #allocation0 [shape = 'u32[]', space=smem, size = 0x4, offset = 0x4, fixed_abs, tag = 'smem constant byte address 0x4 - core index']
  #allocation1 [shape = 'u32[144,128]{1,0:T(1,128)}', space=vmem, size = 0x12000, scoped, tag = 'internal scratch']
  %s0 = inlined_call_operand.vmem [shape: bf16[128,16], index: 0, kind: input, shape index: {}]
  %s1 = inlined_call_operand.vmem [shape: bf16[16,128], index: 1, kind: input, shape index: {}]
  %s2 = inlined_call_operand.hbm [shape: bf16[128,128], index: 2, kind: output, shape index: {}]
  %s3 = sld [smem:[#allocation0]]
  $region41: #{tpu_custom_call.1} parent=0
    _
  %s5 = ssub.s32 1, %s3
  %s6 = scalar_select 0, %s5, %s3
  $region1: #{tpu_custom_call.1} parent=0
    #allocation2 [shape = 'u8[32768]{0}', space=vmem, size = 0x8000, scoped, tag = 'output window, operand 0']
    #allocation3 [shape = 's32[2]{0}', space=sflag, size = 0x8, scoped, tag = 'scoped memory for tpu_custom_call.1']
    %7 = vsyncpa [#allocation3], 0
    %s8 = scalar_lea.sflag [#allocation3], 1
    %9 = vsyncpa %s8, 0
    loop: start=0, step=1, limit=4
    $region2: #{tpu_custom_call.1} parent=1 // loop_pre_header
      _
    $region3: #{tpu_custom_call.1} parent=1 // loop_header
      %s11 = sphi 0, %s15
      %p12 = scmp.ge.s32.totalorder %s11, 4
      %s21 = sphi 0, %s23
      %s24 = sphi 0, %s21
      %s25 = sphi 0, %s24
      %s41 = sphi 0, %s25
      %s45 = sphi 0, %s45
      %s47 = sphi 0, %s45
      %s48 = sphi 0, %s47
      %s62 = sphi 0, %s48
      %s68 = sphi 0, %s70
      %s71 = sphi 0, %s68
      %s72 = sphi 0, %s71
      %s88 = sphi 0, %s72
    $region4: #{tpu_custom_call.1} parent=1 // loop_header_branch
      %14 = sbr.rel (%p12) target = $region8
    $region5: #{tpu_custom_call.1} parent=1 // loop_body
      %s16 = ssub.s32 %s11, 1
      %s17 = ssub.s32 %s11, 2
      %s18 = sadd.s32 %s11, 1
      %s19 = ssub.s32 %s11, %s18
      %p20 = scmp.eq.s32.totalorder %s19, 0
      %s22 = sadd.s32 %s21, 1
      %s23 = scalar_select %p20, %s21, %s22
      %p26 = pneg %p20
      %p27 = scmp.eq.s32.totalorder %s11, 1
      %p28 = por %p26, %p27
      %p29 = scmp.ne.s32.totalorder %s21, %s24
      %p30 = scmp.eq.s32.totalorder %s11, 0
      %p31 = por %p29, %p30
      %p32 = scmp.ne.s32.totalorder %s21, %s24
      %p33 = scmp.eq.s32.totalorder %s16, 1
      %p34 = por %p32, %p33
      %p35 = scmp.ne.s32.totalorder %s24, %s25
      %p36 = scmp.eq.s32.totalorder %s16, 0
      %p37 = por %p35, %p36
      %p38 = scmp.ne.s32.totalorder %s24, %s25
      %p39 = scmp.eq.s32.totalorder %s17, 1
      %p40 = por %p38, %p39
      %p42 = scmp.ne.s32.totalorder %s25, %s41
      %p43 = scmp.eq.s32.totalorder %s17, 0
      %p44 = por %p42, %p43
      %s46 = sadd.s32 %s45, 1
      %p49 = scmp.eq.s32.totalorder %s11, 1
      %p50 = scmp.ne.s32.totalorder %s45, %s47
      %p51 = scmp.eq.s32.totalorder %s11, 0
      %p52 = por %p50, %p51
      %p53 = scmp.ne.s32.totalorder %s45, %s47
      %p54 = scmp.eq.s32.totalorder %s16, 1
      %p55 = por %p53, %p54
      %p56 = scmp.ne.s32.totalorder %s47, %s48
      %p57 = scmp.eq.s32.totalorder %s16, 0
      %p58 = por %p56, %p57
      %p59 = scmp.ne.s32.totalorder %s47, %s48
      %p60 = scmp.eq.s32.totalorder %s17, 1
      %p61 = por %p59, %p60
      %p63 = scmp.ne.s32.totalorder %s48, %s62
      %p64 = scmp.eq.s32.totalorder %s17, 0
      %p65 = por %p63, %p64
      %s66 = ssub.s32 %s11, %s18
      %p67 = scmp.eq.s32.totalorder %s66, 0
      %s69 = sadd.s32 %s68, 1
      %s70 = scalar_select %p67, %s68, %s69
      %p73 = pneg %p67
      %p74 = scmp.eq.s32.totalorder %s11, 1
      %p75 = por %p73, %p74
      %p76 = scmp.ne.s32.totalorder %s68, %s71
      %p77 = scmp.eq.s32.totalorder %s11, 0
      %p78 = por %p76, %p77
      %p79 = scmp.ne.s32.totalorder %s68, %s71
      %p80 = scmp.eq.s32.totalorder %s16, 1
      %p81 = por %p79, %p80
      %p82 = scmp.ne.s32.totalorder %s71, %s72
      %p83 = scmp.eq.s32.totalorder %s16, 0
      %p84 = por %p82, %p83
      %p85 = scmp.ne.s32.totalorder %s71, %s72
      %p86 = scmp.eq.s32.totalorder %s17, 1
      %p87 = por %p85, %p86
      %p89 = scmp.ne.s32.totalorder %s72, %s88
      %p90 = scmp.eq.s32.totalorder %s17, 0
      %p91 = por %p89, %p90
      %p92 = scmp.le.s32.totalorder 1, %s11
      %p93 = scmp.lt.s32.totalorder %s11, 3
      %p94 = pnand %p92, %p93
      %p95 = pneg %p94
      // Predicated region
      $region9: #{tpu_custom_call.1} parent=5 // pred_check
        _
      $region10: #{tpu_custom_call.1} parent=5 // pred_check_branch
        %97 = sbr.rel (%p94) target = $region12
      $region11: #{tpu_custom_call.1} parent=5 // pred_region
        %s98 = ssub.s32 %s11, 1
        // Predicated region
        $region13: #{tpu_custom_call.1} parent=11 // pred_check
          %p99 = pneg %p58
        $region14: #{tpu_custom_call.1} parent=11 // pred_check_branch
          %101 = sbr.rel (%p99) target = $region16
        $region15: #{tpu_custom_call.1} parent=11 // pred_region
          _
        $region16: #{tpu_custom_call.1} parent=11 // pred_fallthru
          _
      $region12: #{tpu_custom_call.1} parent=5 // pred_fallthru
        _
      %p102 = scmp.lt.s32.totalorder %s11, 2
      // Predicated region
      $region17: #{tpu_custom_call.1} parent=5 // pred_check
        %p103 = pneg %p102
      $region18: #{tpu_custom_call.1} parent=5 // pred_check_branch
        %105 = sbr.rel (%p103) target = $region20
      $region19: #{tpu_custom_call.1} parent=5 // pred_region
        // Predicated region
        $region21: #{tpu_custom_call.1} parent=19 // pred_check
          %p106 = pneg %p31
        $region22: #{tpu_custom_call.1} parent=19 // pred_check_branch
          %108 = sbr.rel (%p106) target = $region24
        $region23: #{tpu_custom_call.1} parent=19 // pred_region
          %s109 = smul.u32 8, %s11
          %p110 = scmp.lt.s32.totalorder %s109, 15
          %s111 = scalar_select %p110, %s109, 15
          %s112 = smul.addr %s111, 4
          %s113 = scalar_lea.vmem %s0, %s112
          %s114 = smul.u32 8, %s11
        $region24: #{tpu_custom_call.1} parent=19 // pred_fallthru
          _
      $region20: #{tpu_custom_call.1} parent=5 // pred_fallthru
        _
      %p115 = scmp.le.s32.totalorder 1, %s11
      %p116 = scmp.lt.s32.totalorder %s11, 3
      %p117 = pnand %p115, %p116
      %p118 = pneg %p117
      // Predicated region
      $region25: #{tpu_custom_call.1} parent=5 // pred_check
        _
      $region26: #{tpu_custom_call.1} parent=5 // pred_check_branch
        %120 = sbr.rel (%p117) target = $region28
      $region27: #{tpu_custom_call.1} parent=5 // pred_region
        %s121 = ssub.s32 %s11, 1
        %s122 = smul.u32 8, %s16
        %p123 = scmp.lt.s32.totalorder %s122, 15
        %s124 = scalar_select %p123, %s122, 15
        %s125 = smul.addr %s124, 4
        %s126 = scalar_lea.vmem %s0, %s125
        %p127 = pneg %p37
        %p128 = pneg %p34
        %p129 = pneg %p58
        %p130 = pneg %p55
        %p131 = pneg %p84
        %p132 = pneg %p81
        %s133 = sand.u32 %s71, 1
        %s134 = scalar_lea.sflag [#allocation3], %s133
        %s135 = sand.u32 %s71, 1
        %s136 = smul.addr %s135, 32
        %s137 = scalar_lea.vmem [#allocation2], %s136
        %s138 = smul.u32 8, %s16
        %p139 = scmp.lt.s32.totalorder %s138, 15
        %s140 = scalar_select %p139, %s138, 15
        %s141 = smul.addr %s140, 4
        %s142 = scalar_lea.vmem %s0, %s141
        %s143 = smul.u32 8, %s16
        %s144 = smul.u32 8, %s16
        %v146 = vld [vmem:[%s142] sm:$0xf]
        %v147 = vld [vmem:[%s142 + $0x4] sm:$0xf]
        %v148 = vld [vmem:[%s142 + $0x8] sm:$0xf]
        %v149 = vld [vmem:[%s142 + $0xc] sm:$0xf]
        %v150 = vld [vmem:[%s142 + $0x10] sm:$0xf]
        %v151 = vld [vmem:[%s142 + $0x14] sm:$0xf]
        %v152 = vld [vmem:[%s142 + $0x18] sm:$0xf]
        %v153 = vld [vmem:[%s142 + $0x1c] sm:$0xf]
        %v154 = vld [vmem:[%s1] sm:$0xf]
        %v155 = vld [vmem:[%s1 + $0x4] sm:$0xf]
        %v164 = vunpack.c.l.b16 %v146
        %v165 = vunpack.c.l.b16 %v147
        %v166 = vunpack.c.l.b16 %v148
        %v167 = vunpack.c.l.b16 %v149
        %v168 = vunpack.c.l.b16 %v150
        %v169 = vunpack.c.l.b16 %v151
        %v170 = vunpack.c.l.b16 %v152
        %v171 = vunpack.c.l.b16 %v153
        %v172 = vpack.c.b16 %v165, %v164
        %v173 = vpack.c.b16 %v167, %v166
        %v174 = vpack.c.b16 %v169, %v168
        %v175 = vpack.c.b16 %v171, %v170
        %v178 = vunpack.c.l.b16 %v154
        %v179 = vunpack.c.l.b16 %v155
        %v180 = vpack.c.b16 %v179, %v178
        %vm182 = vcmask 130048
        %v184 = vsel %vm182, %v172, 0
        %v187 = vsel %vm182, %v173, 0
        %v190 = vsel %vm182, %v174, 0
        %v193 = vsel %vm182, %v175, 0
        %195 = vmatprep.subr.bf16.mxu0 0
        %196 = vmatpush1.bf16.msra.mxu0 %v180
        %197 = vmatprep.subr.bf16.mxu0 0
        %198 = vmatpush1.bf16.msra.mxu0 0
        %199 = vmatprep.subr.bf16.mxu0 0
        %200 = vmatpush1.bf16.msra.mxu0 0
        %201 = vmatprep.subr.bf16.mxu0 0
        %202 = vmatpush1.bf16.msra.mxu0 0
        %203 = vmatprep.subr.bf16.mxu0 0
        %204 = vmatpush1.bf16.msra.mxu0 0
        %205 = vmatprep.subr.bf16.mxu0 0
        %206 = vmatpush1.bf16.msra.mxu0 0
        %207 = vmatprep.subr.bf16.mxu0 0
        %208 = vmatpush1.bf16.msra.mxu0 0
        %209 = vmatprep.subr.bf16.mxu0 0
        %210 = vmatpush1.bf16.msra.mxu0 0
        %211 = vmatprep.subr.bf16.mxu0 0
        %212 = vmatpush1.bf16.msra.mxu0 0
        %213 = vmatprep.subr.bf16.mxu0 0
        %214 = vmatpush1.bf16.msra.mxu0 0
        %215 = vmatprep.subr.bf16.mxu0 0
        %216 = vmatpush1.bf16.msra.mxu0 0
        %217 = vmatprep.subr.bf16.mxu0 0
        %218 = vmatpush1.bf16.msra.mxu0 0
        %219 = vmatprep.subr.bf16.mxu0 0
        %220 = vmatpush1.bf16.msra.mxu0 0
        %221 = vmatprep.subr.bf16.mxu0 0
        %222 = vmatpush1.bf16.msra.mxu0 0
        %223 = vmatprep.subr.bf16.mxu0 0
        %224 = vmatpush1.bf16.msra.mxu0 0
        %225 = vmatprep.subr.bf16.mxu0 0
        %226 = vmatpush1.bf16.msra.mxu0 0
        %227 = vmatprep.mubr.bf16.mxu0 0
        %228 = vmatmul.mubr.bf16.gmra.mrb[0].mxu0 %v184
        %v229 = vpop.f32.mrb[0].mxu0
        %v230 = vadd.f32 0.0, %v229
        %v231 = vpop.f32.mrb[0].mxu0
        %v232 = vpop.f32.mrb[0].mxu0
        %v233 = vadd.f32 0.0, %v232
        %v234 = vpop.f32.mrb[0].mxu0
        %235 = vmatprep.mubr.bf16.mxu0 0
        %236 = vmatmul.mubr.bf16.gmra.mrb[0].mxu0 %v187
        %v237 = vpop.f32.mrb[0].mxu0
        %v238 = vadd.f32 0.0, %v237
        %v239 = vpop.f32.mrb[0].mxu0
        %v240 = vpop.f32.mrb[0].mxu0
        %v241 = vadd.f32 0.0, %v240
        %v242 = vpop.f32.mrb[0].mxu0
        %243 = vmatprep.mubr.bf16.mxu0 0
        %244 = vmatmul.mubr.bf16.gmra.mrb[0].mxu0 %v190
        %v245 = vpop.f32.mrb[0].mxu0
        %v246 = vadd.f32 0.0, %v245
        %v247 = vpop.f32.mrb[0].mxu0
        %v248 = vpop.f32.mrb[0].mxu0
        %v249 = vadd.f32 0.0, %v248
        %v250 = vpop.f32.mrb[0].mxu0
        %251 = vmatprep.mubr.bf16.mxu0 0
        %252 = vmatmul.mubr.bf16.gmra.mrb[0].mxu0 %v193
        %v253 = vpop.f32.mrb[0].mxu0
        %v254 = vadd.f32 0.0, %v253
        %v255 = vpop.f32.mrb[0].mxu0
        %v256 = vpop.f32.mrb[0].mxu0
        %v257 = vadd.f32 0.0, %v256
        %v258 = vpop.f32.mrb[0].mxu0
        %259 = vdwg.mxu0
        %v260 = vpack.c.bf16 %v233, %v230
        %v261 = vpack.c.bf16 %v241, %v238
        %v262 = vpack.c.bf16 %v249, %v246
        %v263 = vpack.c.bf16 %v257, %v254
        %v268 = vunpack.c.l.b16 %v260
        %v269 = vunpack.c.h.b16 %v260
        %v270 = vunpack.c.l.b16 %v261
        %v271 = vunpack.c.h.b16 %v261
        %v272 = vunpack.c.l.b16 %v262
        %v273 = vunpack.c.h.b16 %v262
        %v274 = vunpack.c.l.b16 %v263
        %v275 = vunpack.c.h.b16 %v263
        %v276 = vpack.c.b16 %v268, %v268
        %v277 = vpack.c.b16 %v269, %v269
        %v278 = vpack.c.b16 %v270, %v270
        %v279 = vpack.c.b16 %v271, %v271
        %v280 = vpack.c.b16 %v272, %v272
        %v281 = vpack.c.b16 %v273, %v273
        %v282 = vpack.c.b16 %v274, %v274
        %v283 = vpack.c.b16 %v275, %v275
        %292 = vst [vmem:[%s137] sm:$0xf] %v276
        %293 = vst [vmem:[%s137 + $0x4] sm:$0xf] %v277
        %294 = vst [vmem:[%s137 + $0x8] sm:$0xf] %v278
        %295 = vst [vmem:[%s137 + $0xc] sm:$0xf] %v279
        %296 = vst [vmem:[%s137 + $0x10] sm:$0xf] %v280
        %297 = vst [vmem:[%s137 + $0x14] sm:$0xf] %v281
        %298 = vst [vmem:[%s137 + $0x18] sm:$0xf] %v282
        %299 = vst [vmem:[%s137 + $0x1c] sm:$0xf] %v283
        %s300 = sand.u32 %s71, 1
        %s301 = scalar_lea.sflag [#allocation3], %s300
        %s302 = sand.u32 %s71, 1
        %s303 = smul.addr %s302, 32
        %s304 = scalar_lea.vmem [#allocation2], %s303
        // Predicated region
        $region29: #{tpu_custom_call.1} parent=27 // pred_check
          %p305 = pneg %p81
        $region30: #{tpu_custom_call.1} parent=27 // pred_check_branch
          %307 = sbr.rel (%p305) target = $region32
        $region31: #{tpu_custom_call.1} parent=27 // pred_region
          %s308 = smul.u32 8, %s16
          %s310 = ssub.s32 512, 512
          %311 = vsyncadd %s301, %s310
          %s312 = smul.addr %s308, 64
          %s313 = scalar_lea.hbm %s2, %s312
          %s314 = sshll.u32 %s304, 4
          %s315 = int_to_ptr.vmem [resolvable:$true] %s314
          %320 = dma.vmem_to_hbm [thread:$0]  %s315, 512, %s313, %s301, 64, 64, 4
        $region32: #{tpu_custom_call.1} parent=27 // pred_fallthru
          _
      $region28: #{tpu_custom_call.1} parent=5 // pred_fallthru
        _
      %p321 = scmp.le.s32.totalorder 2, %s11
      // Predicated region
      $region33: #{tpu_custom_call.1} parent=5 // pred_check
        %p322 = pneg %p321
      $region34: #{tpu_custom_call.1} parent=5 // pred_check_branch
        %324 = sbr.rel (%p322) target = $region36
      $region35: #{tpu_custom_call.1} parent=5 // pred_region
        %s325 = ssub.s32 %s11, 2
        // Predicated region
        $region37: #{tpu_custom_call.1} parent=35 // pred_check
          %p326 = pneg %p87
        $region38: #{tpu_custom_call.1} parent=35 // pred_check_branch
          %328 = sbr.rel (%p326) target = $region40
        $region39: #{tpu_custom_call.1} parent=35 // pred_region
          %s329 = sand.u32 %s72, 1
          %s330 = scalar_lea.sflag [#allocation3], %s329
          %s331 = sand.u32 %s72, 1
          %s332 = smul.addr %s331, 32
          %s333 = scalar_lea.vmem [#allocation2], %s332
          %334 = dma.done %s330, 512
        $region40: #{tpu_custom_call.1} parent=35 // pred_fallthru
          _
      $region36: #{tpu_custom_call.1} parent=5 // pred_fallthru
        _
    $region6: #{tpu_custom_call.1} parent=1 // loop_footer
      %s15 = sadd.s32 1, %s11
    $region7: #{tpu_custom_call.1} parent=1 // loop_footer_branch
      %10 = sbr.rel target = $region3
    $region8: #{tpu_custom_call.1} parent=1 // loop_exit
      _
    %335 = vsyncpa [#allocation3], 1
    %s336 = scalar_lea.sflag [#allocation3], 1
    %337 = vsyncpa %s336, 1

</llo_original>
